<compile_context>
chip_gen: v6e
topology: v6e:2x2x1
jax: 0.10.0
libtpu: 0.0.40
codegen_flags: <defaults>
</compile_context>

<pallas_src>
import functools

import jax
import jax.numpy as jnp
from jax.experimental import pallas as pl
from jax.experimental.pallas import tpu as pltpu

LANE = 128
SUBLANE = 8
BF16_SUBLANE = 16   # bf16 packs 2 rows per sublane -> keep slab offsets 16-aligned
MAX_TILE_B = 8192   # VMEM safety cap (per-step buffers stay << 32 MiB scoped limit)
OUT_PAD = 8         # kernel output lanes (3 real logits, zero-padded to 8)


def _round_up(x, m):
    return (x + m - 1) // m * m


def _layer_dims(input_size, hidden_size, n_layers):
    # n_layers hidden Linear(+ReLU) layers, then Linear(hidden_size, 3).
    return [input_size] + [hidden_size] * n_layers + [3]


def _k_pads(input_size, n_linear):
    # Padded contraction dim per linear layer.  First layer consumes the
    # 16-row-padded input features (16-aligned so static slices of the bf16
    # slab never split a packed sublane pair); later layers consume the
    # 128-lane activation produced by the previous matmul.
    return (_round_up(input_size, BF16_SUBLANE),) + (LANE,) * (n_linear - 1)


def pack_params(params, input_size, hidden_size, n_layers):
    """Pack flat [w0, b0, ..., w_out, b_out] (w: (in, out), b: (1, out)) into a
    zero-padded bf16 weight slab (sum(k_pads), 128) and f32 bias slab (8, 128).
    Zero padding keeps the math identical to the PyTorch module."""
    dims = _layer_dims(input_size, hidden_size, n_layers)
    n_linear = len(dims) - 1
    k_pads = _k_pads(input_size, n_linear)

    w_slab = jnp.zeros((sum(k_pads), LANE), jnp.float32)
    b_slab = jnp.zeros((_round_up(n_linear, SUBLANE), LANE), jnp.float32)
    row = 0
    for i in range(n_linear):
        w, b = params[2 * i], params[2 * i + 1]
        fan_in, fan_out = w.shape
        w_slab = w_slab.at[row:row + fan_in, :fan_out].set(w.astype(jnp.float32))
        b_slab = b_slab.at[i, :fan_out].set(b.reshape(-1).astype(jnp.float32))
        row += k_pads[i]
    return w_slab.astype(jnp.bfloat16), b_slab


def _mlp_kernel(x_ref, w_ref, b_ref, o_ref, *, k_pads, n_linear, input_size):
    # x_ref: (tile_b, k_pads[0]) f32    w_ref: (sum(k_pads), 128) bf16
    # b_ref: (8, 128) f32               o_ref: (tile_b, OUT_PAD) f32
    x = x_ref[...].astype(jnp.float32)

    # ---- layer 0 -----------------------------------------------------------
    if input_size <= 16:
        # Lane-sparse LHS: a few VPU broadcast-FMAs directly in the 128-lane
        # output layout beat a ~94%-idle MXU pass.  Padded weight rows are
        # zero, so only the real `input_size` columns need to be touched.
        w0 = w_ref[0:k_pads[0], :].astype(jnp.float32)          # (k0, 128)
        h = x[:, 0:1] * w0[0:1, :] + b_ref[0:1, :]
        for j in range(1, input_size):
            h = h + x[:, j:j + 1] * w0[j:j + 1, :]
    else:
        h = jnp.dot(x.astype(jnp.bfloat16), w_ref[0:k_pads[0], :],
                    preferred_element_type=jnp.float32) + b_ref[0:1, :]
    if n_linear > 1:
        h = jnp.maximum(h, 0.0)                                  # ReLU (hidden)

    # ---- hidden + output layers: MXU, bf16 operands / f32 accumulate -------
    row = k_pads[0]
    for i in range(1, n_linear):
        kp = k_pads[i]
        w = w_ref[row:row + kp, :]          # static, 16-row-aligned slice (free)
        h = jnp.dot(h.astype(jnp.bfloat16), w,
                    preferred_element_type=jnp.float32) + b_ref[i:i + 1, :]
        if i < n_linear - 1:                # ReLU on hidden layers only
            h = jnp.maximum(h, 0.0)
        row += kp

    # Store only the (padded-to-8) real logit lanes -> 16x less HBM writeback
    # than a 128-lane output.
    o_ref[...] = h[:, :o_ref.shape[-1]].astype(o_ref.dtype)


@functools.partial(
    jax.jit,
    static_argnames=("input_size", "hidden_size", "n_layers", "tile_b"),
)
def iris_classifier_forward(x, w_slab, b_slab, *, input_size, hidden_size,
                            n_layers, tile_b=2048):
    dims = _layer_dims(input_size, hidden_size, n_layers)
    n_linear = len(dims) - 1
    k_pads = _k_pads(input_size, n_linear)
    k0 = k_pads[0]

    batch = x.shape[0]
    batch_sub = _round_up(batch, SUBLANE)

    # tile_b: sublane multiple, no larger than the padded batch, VMEM-capped.
    tile_b = max(SUBLANE, min(_round_up(tile_b, SUBLANE), MAX_TILE_B, batch_sub))
    # v7x megacore: ensure >= 2 grid steps whenever the batch allows so the
    # "parallel" grid axis actually splits across both TensorCores (harmless
    # on v5e/v6e, which have a single TC).
    if batch_sub >= 2 * SUBLANE:
        tile_b = min(tile_b, _round_up(batch_sub // 2, SUBLANE))
    batch_pad = _round_up(batch, tile_b)

    # Zero-pad x rows (batch tiling) and columns (to the zero-padded layer-0
    # weight rows).  Features are NOT padded to 128 lanes.
    x_pad = jnp.zeros((batch_pad, k0), jnp.float32)
    x_pad = x_pad.at[:batch, :input_size].set(x.astype(jnp.float32))

    kernel = functools.partial(_mlp_kernel, k_pads=k_pads, n_linear=n_linear,
                               input_size=input_size)

    # Constant index_map -> fetched once; single-buffer to avoid a duplicate
    # VMEM copy of the resident slabs.
    resident = dict(pipeline_mode=pl.Buffered(1))

    out = pl.pallas_call(
        kernel,
        out_shape=jax.ShapeDtypeStruct((batch_pad, OUT_PAD), jnp.float32),
        grid=(batch_pad // tile_b,),
        in_specs=[
            pl.BlockSpec((tile_b, k0), lambda i: (i, 0)),               # activations
            pl.BlockSpec(w_slab.shape, lambda i: (0, 0), **resident),   # weights (bf16)
            pl.BlockSpec(b_slab.shape, lambda i: (0, 0), **resident),   # biases (f32)
        ],
        out_specs=pl.BlockSpec((tile_b, OUT_PAD), lambda i: (i, 0)),
        compiler_params=pltpu.CompilerParams(
            dimension_semantics=("parallel",)),
    )(x_pad, w_slab, b_slab)

    return out[:batch, :dims[-1]]


def init_params(key, input_size, hidden_size, n_layers):
    """Deterministic init mimicking nn.Linear's uniform(-1/sqrt(fan_in), ...).
    Weights stored as (in_features, out_features), i.e. transposed vs torch."""
    dims = _layer_dims(input_size, hidden_size, n_layers)
    params = []
    for i in range(len(dims) - 1):
        fan_in, fan_out = dims[i], dims[i + 1]
        key, kw, kb = jax.random.split(key, 3)
        bound = 1.0 / (fan_in ** 0.5)
        w = jax.random.uniform(kw, (fan_in, fan_out), jnp.float32, -bound, bound)
        b = jax.random.uniform(kb, (1, fan_out), jnp.float32, -bound, bound)
        params += [w, b]
    return params


def reference_forward(x, params):
    n_linear = len(params) // 2
    h = x
    for i in range(n_linear):
        h = h @ params[2 * i] + params[2 * i + 1]
        if i < n_linear - 1:
            h = jnp.maximum(h, 0.0)
    return h


if __name__ == "__main__":
    input_size, hidden_size, n_layers = 4, 32, 3
    batch = 8

    key = jax.random.PRNGKey(0)
    key, kx = jax.random.split(key)
    x = jax.random.normal(kx, (batch, input_size), jnp.float32)
    params = init_params(key, input_size, hidden_size, n_layers)

    # One-time host-side packing into padded slabs (bf16 weights, f32 biases).
    w_slab, b_slab = pack_params(params, input_size, hidden_size, n_layers)

    y = iris_classifier_forward(
        x, w_slab, b_slab,
        input_size=input_size, hidden_size=hidden_size, n_layers=n_layers)
    y = jax.block_until_ready(y)

    y_ref = reference_forward(x, params)
    assert y.shape == (batch, 3)
    # bf16 matmul operands (f32 accumulation) -> relaxed tolerance vs f32 ref.
    assert jnp.allclose(y, y_ref, atol=5e-2, rtol=5e-2), (
        float(jnp.max(jnp.abs(y - y_ref))))
    print("KERNEL_OK")
</pallas_src>

<mosaic_0001>
module attributes {stable_mosaic.version = 11 : i64} {
  func.func @_mlp_kernel(%arg0: i32, %arg1: memref<8x16xf32, #tpu.memory_space<vmem>>, %arg2: memref<400x128xbf16, #tpu.memory_space<vmem>>, %arg3: memref<8x128xf32, #tpu.memory_space<vmem>>, %arg4: memref<8x8xf32, #tpu.memory_space<vmem>>) attributes {dimension_semantics = [#tpu.dimension_semantics<parallel>], iteration_bounds = array<i64: 1>, scalar_prefetch = 0 : i64, scratch_operands = 0 : i64, tpu.core_type = #tpu.core_type<tc>, window_params = [{transform_indices = @transform_0, window_bounds = array<i64: 8, 16>}, {pipeline_mode = #tpu.pipeline_mode<synchronous>, transform_indices = @transform_1, window_bounds = array<i64: 400, 128>}, {pipeline_mode = #tpu.pipeline_mode<synchronous>, transform_indices = @transform_2, window_bounds = array<i64: 8, 128>}, {transform_indices = @transform_3, window_bounds = array<i64: 8, 8>}]} {
    %c0 = arith.constant 0 : index
    %c0_0 = arith.constant 0 : index
    %0 = vector.load %arg1[%c0, %c0_0] : memref<8x16xf32, #tpu.memory_space<vmem>>, vector<8x16xf32>
    %c0_1 = arith.constant 0 : index
    %c0_2 = arith.constant 0 : index
    %1 = vector.load %arg2[%c0_1, %c0_2] : memref<400x128xbf16, #tpu.memory_space<vmem>>, vector<16x128xbf16>
    %2 = arith.extf %1 : vector<16x128xbf16> to vector<16x128xf32>
    %3 = vector.extract_strided_slice %0 {offsets = [0, 0], sizes = [8, 1], strides = [1, 1]} : vector<8x16xf32> to vector<8x1xf32>
    %4 = vector.extract_strided_slice %2 {offsets = [0, 0], sizes = [1, 128], strides = [1, 1]} : vector<16x128xf32> to vector<1x128xf32>
    %5 = vector.broadcast %3 : vector<8x1xf32> to vector<8x128xf32>
    %6 = vector.broadcast %4 : vector<1x128xf32> to vector<8x128xf32>
    %7 = arith.mulf %5, %6 : vector<8x128xf32>
    %c0_3 = arith.constant 0 : index
    %c0_4 = arith.constant 0 : index
    %8 = vector.load %arg3[%c0_3, %c0_4] : memref<8x128xf32, #tpu.memory_space<vmem>>, vector<1x128xf32>
    %9 = vector.broadcast %8 : vector<1x128xf32> to vector<8x128xf32>
    %10 = arith.addf %7, %9 : vector<8x128xf32>
    %11 = vector.extract_strided_slice %0 {offsets = [0, 1], sizes = [8, 1], strides = [1, 1]} : vector<8x16xf32> to vector<8x1xf32>
    %12 = vector.extract_strided_slice %2 {offsets = [1, 0], sizes = [1, 128], strides = [1, 1]} : vector<16x128xf32> to vector<1x128xf32>
    %13 = vector.broadcast %11 : vector<8x1xf32> to vector<8x128xf32>
    %14 = vector.broadcast %12 : vector<1x128xf32> to vector<8x128xf32>
    %15 = arith.mulf %13, %14 : vector<8x128xf32>
    %16 = arith.addf %10, %15 : vector<8x128xf32>
    %17 = vector.extract_strided_slice %0 {offsets = [0, 2], sizes = [8, 1], strides = [1, 1]} : vector<8x16xf32> to vector<8x1xf32>
    %18 = vector.extract_strided_slice %2 {offsets = [2, 0], sizes = [1, 128], strides = [1, 1]} : vector<16x128xf32> to vector<1x128xf32>
    %19 = vector.broadcast %17 : vector<8x1xf32> to vector<8x128xf32>
    %20 = vector.broadcast %18 : vector<1x128xf32> to vector<8x128xf32>
    %21 = arith.mulf %19, %20 : vector<8x128xf32>
    %22 = arith.addf %16, %21 : vector<8x128xf32>
    %23 = vector.extract_strided_slice %0 {offsets = [0, 3], sizes = [8, 1], strides = [1, 1]} : vector<8x16xf32> to vector<8x1xf32>
    %24 = vector.extract_strided_slice %2 {offsets = [3, 0], sizes = [1, 128], strides = [1, 1]} : vector<16x128xf32> to vector<1x128xf32>
    %25 = vector.broadcast %23 : vector<8x1xf32> to vector<8x128xf32>
    %26 = vector.broadcast %24 : vector<1x128xf32> to vector<8x128xf32>
    %27 = arith.mulf %25, %26 : vector<8x128xf32>
    %28 = arith.addf %22, %27 : vector<8x128xf32>
    %cst = arith.constant 0.000000e+00 : f32
    %29 = vector.broadcast %cst : f32 to vector<8x128xf32>
    %30 = arith.maximumf %28, %29 : vector<8x128xf32>
    %c16 = arith.constant 16 : index
    %c0_5 = arith.constant 0 : index
    %31 = vector.load %arg2[%c16, %c0_5] : memref<400x128xbf16, #tpu.memory_space<vmem>>, vector<128x128xbf16>
    %32 = arith.truncf %30 : vector<8x128xf32> to vector<8x128xbf16>
    %cst_6 = arith.constant dense<0.000000e+00> : vector<8x128xf32>
    %33 = tpu.matmul %32, %31, %cst_6 {dimension_numbers = #tpu.dot_dimension_numbers<[1], [0], [0], [1], [0, 0, 1, 1], [], []>} : vector<8x128xbf16>, vector<128x128xbf16>, vector<8x128xf32> -> vector<8x128xf32>
    %c1 = arith.constant 1 : index
    %c0_7 = arith.constant 0 : index
    %34 = vector.load %arg3[%c1, %c0_7] : memref<8x128xf32, #tpu.memory_space<vmem>>, vector<1x128xf32>
    %35 = vector.broadcast %34 : vector<1x128xf32> to vector<8x128xf32>
    %36 = arith.addf %33, %35 : vector<8x128xf32>
    %cst_8 = arith.constant 0.000000e+00 : f32
    %37 = vector.broadcast %cst_8 : f32 to vector<8x128xf32>
    %38 = arith.maximumf %36, %37 : vector<8x128xf32>
    %c144 = arith.constant 144 : index
    %c0_9 = arith.constant 0 : index
    %39 = vector.load %arg2[%c144, %c0_9] : memref<400x128xbf16, #tpu.memory_space<vmem>>, vector<128x128xbf16>
    %40 = arith.truncf %38 : vector<8x128xf32> to vector<8x128xbf16>
    %cst_10 = arith.constant dense<0.000000e+00> : vector<8x128xf32>
    %41 = tpu.matmul %40, %39, %cst_10 {dimension_numbers = #tpu.dot_dimension_numbers<[1], [0], [0], [1], [0, 0, 1, 1], [], []>} : vector<8x128xbf16>, vector<128x128xbf16>, vector<8x128xf32> -> vector<8x128xf32>
    %c2 = arith.constant 2 : index
    %c0_11 = arith.constant 0 : index
    %42 = vector.load %arg3[%c2, %c0_11] : memref<8x128xf32, #tpu.memory_space<vmem>>, vector<1x128xf32>
    %43 = vector.broadcast %42 : vector<1x128xf32> to vector<8x128xf32>
    %44 = arith.addf %41, %43 : vector<8x128xf32>
    %cst_12 = arith.constant 0.000000e+00 : f32
    %45 = vector.broadcast %cst_12 : f32 to vector<8x128xf32>
    %46 = arith.maximumf %44, %45 : vector<8x128xf32>
    %c272 = arith.constant 272 : index
    %c0_13 = arith.constant 0 : index
    %47 = vector.load %arg2[%c272, %c0_13] : memref<400x128xbf16, #tpu.memory_space<vmem>>, vector<128x128xbf16>
    %48 = arith.truncf %46 : vector<8x128xf32> to vector<8x128xbf16>
    %cst_14 = arith.constant dense<0.000000e+00> : vector<8x128xf32>
    %49 = tpu.matmul %48, %47, %cst_14 {dimension_numbers = #tpu.dot_dimension_numbers<[1], [0], [0], [1], [0, 0, 1, 1], [], []>} : vector<8x128xbf16>, vector<128x128xbf16>, vector<8x128xf32> -> vector<8x128xf32>
    %c3 = arith.constant 3 : index
    %c0_15 = arith.constant 0 : index
    %50 = vector.load %arg3[%c3, %c0_15] : memref<8x128xf32, #tpu.memory_space<vmem>>, vector<1x128xf32>
    %51 = vector.broadcast %50 : vector<1x128xf32> to vector<8x128xf32>
    %52 = arith.addf %49, %51 : vector<8x128xf32>
    %53 = vector.extract_strided_slice %52 {offsets = [0, 0], sizes = [8, 8], strides = [1, 1]} : vector<8x128xf32> to vector<8x8xf32>
    %c0_16 = arith.constant 0 : index
    %c0_17 = arith.constant 0 : index
    %54 = vector.load %arg4[%c0_16, %c0_17] : memref<8x8xf32, #tpu.memory_space<vmem>>, vector<8x8xf32>
    tpu.vector_store %arg4[%c0_16, %c0_17], %53 {strides = array<i32>} : memref<8x8xf32, #tpu.memory_space<vmem>>, vector<8x8xf32>,
    return
  }
  func.func @transform_0(%arg0: i32) -> (i32, i32) {
    %c0_i32 = arith.constant 0 : i32
    %c0_i32_0 = arith.constant 0 : i32
    return %arg0, %c0_i32 : i32, i32
  }
  func.func @transform_1(%arg0: i32) -> (i32, i32) {
    %c0_i32 = arith.constant 0 : i32
    %c0_i32_0 = arith.constant 0 : i32
    %c0_i32_1 = arith.constant 0 : i32
    return %c0_i32, %c0_i32_0 : i32, i32
  }
  func.func @transform_2(%arg0: i32) -> (i32, i32) {
    %c0_i32 = arith.constant 0 : i32
    %c0_i32_0 = arith.constant 0 : i32
    %c0_i32_1 = arith.constant 0 : i32
    return %c0_i32, %c0_i32_0 : i32, i32
  }
  func.func @transform_3(%arg0: i32) -> (i32, i32) {
    %c0_i32 = arith.constant 0 : i32
    %c0_i32_0 = arith.constant 0 : i32
    return %arg0, %c0_i32 : i32, i32
  }
}

</mosaic_0001>

<llo_original>
// kernel: iris_classifier_forward.1
$region0: #{iris_classifier_forward.1}
  #allocation0 [shape = 'u32[]', space=smem, size = 0x4, offset = 0x4, fixed_abs, tag = 'smem constant byte address 0x4 - core index']
  #allocation1 [shape = 'u32[144,128]{1,0:T(1,128)}', space=vmem, size = 0x12000, scoped, tag = 'internal scratch']
  %s0 = inlined_call_operand.vmem [shape: f32[8,16], index: 0, kind: input, shape index: {}]
  %s1 = inlined_call_operand.hbm [shape: bf16[400,128], index: 1, kind: input, shape index: {}]
  %s2 = inlined_call_operand.vmem [shape: f32[8,128], index: 2, kind: input, shape index: {}]
  %s3 = inlined_call_operand.vmem [shape: f32[8,8], index: 3, kind: output, shape index: {}]
  %s4 = sld [smem:[#allocation0]]
  $region26: #{iris_classifier_forward.1} parent=0
    _
  %s6 = ssub.s32 1, %s4
  %s7 = scalar_select 0, %s6, %s4
  $region1: #{iris_classifier_forward.1} parent=0
    #allocation2 [shape = 'u8[102400]{0}', space=vmem, size = 0x19000, scoped, tag = 'input window, operand 1, single buffered']
    #allocation3 [shape = 's32[1]{0}', space=sflag, size = 0x4, scoped, tag = 'scoped memory for iris_classifier_forward.1']
    %8 = vsyncpa [#allocation3], 0
    // Predicated region
    $region2: #{iris_classifier_forward.1} parent=1 // pred_check
      _
    $region3: #{iris_classifier_forward.1} parent=1 // pred_check_branch
      %10 = sbr.rel (0) target = $region5
    $region4: #{iris_classifier_forward.1} parent=1 // pred_region
      _
    $region5: #{iris_classifier_forward.1} parent=1 // pred_fallthru
      _
    // Predicated region
    $region6: #{iris_classifier_forward.1} parent=1 // pred_check
      _
    $region7: #{iris_classifier_forward.1} parent=1 // pred_check_branch
      %12 = sbr.rel (0) target = $region9
    $region8: #{iris_classifier_forward.1} parent=1 // pred_region
      %s14 = ssub.s32 3200, 3200
      %15 = vsyncadd [#allocation3], %s14
      %s16 = sshll.u32 [#allocation2], 4
      %s17 = int_to_ptr.vmem [resolvable:$true] %s16
      %22 = dma.hbm_to_vmem [thread:$0]  %s1, 3200, %s17, [#allocation3], 64, 64, 4
    $region9: #{iris_classifier_forward.1} parent=1 // pred_fallthru
      _
    // Predicated region
    $region10: #{iris_classifier_forward.1} parent=1 // pred_check
      _
    $region11: #{iris_classifier_forward.1} parent=1 // pred_check_branch
      %24 = sbr.rel (0) target = $region13
    $region12: #{iris_classifier_forward.1} parent=1 // pred_region
      _
    $region13: #{iris_classifier_forward.1} parent=1 // pred_fallthru
      _
    // Predicated region
    $region14: #{iris_classifier_forward.1} parent=1 // pred_check
      _
    $region15: #{iris_classifier_forward.1} parent=1 // pred_check_branch
      %26 = sbr.rel (0) target = $region17
    $region16: #{iris_classifier_forward.1} parent=1 // pred_region
      %27 = dma.done [#allocation3], 3200
    $region17: #{iris_classifier_forward.1} parent=1 // pred_fallthru
      _
    %v29 = vld [vmem:[%s0] sm:$0xff]
    %v30 = vld [vmem:[#allocation2] sm:$0xf]
    %v31 = vunpack.c.l.bf16 %v30
    %33 = vset.pattern.permute.xlu0 0
    %34 = vperm.xlu0 %33, %v29
    %v35 = vpop.permute.xlu0 %34
    %v37 = vlaneseq
    %v38 = vshrl.u32 %v37, 7
    %v39 = vsub.s32 0, %v38
    %v40 = vrot.slane %v31, %v39
    %v41 = vmul.f32 %v35, %v40
    %v42 = vld [vmem:[%s2] sm:$0x1]
    %v43 = vlaneseq
    %v44 = vshrl.u32 %v43, 7
    %v45 = vsub.s32 0, %v44
    %v46 = vrot.slane %v42, %v45
    %v47 = vadd.f32 %v41, %v46
    %48 = vset.pattern.permute.xlu0 1
    %49 = vperm.xlu0 %48, %v29
    %v50 = vpop.permute.xlu0 %49
    %v52 = vlaneseq
    %v53 = vshrl.u32 %v52, 7
    %v54 = vsub.s32 1, %v53
    %v55 = vrot.slane %v31, %v54
    %v56 = vmul.f32 %v50, %v55
    %v57 = vadd.f32 %v47, %v56
    %58 = vset.pattern.permute.xlu0 2
    %59 = vperm.xlu0 %58, %v29
    %v60 = vpop.permute.xlu0 %59
    %v62 = vlaneseq
    %v63 = vshrl.u32 %v62, 7
    %v64 = vsub.s32 2, %v63
    %v65 = vrot.slane %v31, %v64
    %v66 = vmul.f32 %v60, %v65
    %v67 = vadd.f32 %v57, %v66
    %68 = vset.pattern.permute.xlu0 3
    %69 = vperm.xlu0 %68, %v29
    %v70 = vpop.permute.xlu0 %69
    %v72 = vlaneseq
    %v73 = vshrl.u32 %v72, 7
    %v74 = vsub.s32 3, %v73
    %v75 = vrot.slane %v31, %v74
    %v76 = vmul.f32 %v70, %v75
    %v77 = vadd.f32 %v67, %v76
    %v78 = vmax.f32 %v77, 0.0
    %v79 = vld [vmem:[#allocation2 + $0x8] sm:$0xf]
    %v80 = vld [vmem:[#allocation2 + $0xc] sm:$0xf]
    %v81 = vld [vmem:[#allocation2 + $0x10] sm:$0xf]
    %v82 = vld [vmem:[#allocation2 + $0x14] sm:$0xf]
    %v83 = vld [vmem:[#allocation2 + $0x18] sm:$0xf]
    %v84 = vld [vmem:[#allocation2 + $0x1c] sm:$0xf]
    %v85 = vld [vmem:[#allocation2 + $0x20] sm:$0xf]
    %v86 = vld [vmem:[#allocation2 + $0x24] sm:$0xf]
    %v87 = vld [vmem:[#allocation2 + $0x28] sm:$0xf]
    %v88 = vld [vmem:[#allocation2 + $0x2c] sm:$0xf]
    %v89 = vld [vmem:[#allocation2 + $0x30] sm:$0xf]
    %v90 = vld [vmem:[#allocation2 + $0x34] sm:$0xf]
    %v91 = vld [vmem:[#allocation2 + $0x38] sm:$0xf]
    %v92 = vld [vmem:[#allocation2 + $0x3c] sm:$0xf]
    %v93 = vld [vmem:[#allocation2 + $0x40] sm:$0xf]
    %v94 = vld [vmem:[#allocation2 + $0x44] sm:$0xf]
    %v95 = vpack.c.bf16 %v78, %v78
    %v96 = vld [vmem:[%s2 + $0x1] sm:$0x1]
    %v97 = vlaneseq
    %v98 = vshrl.u32 %v97, 7
    %v99 = vsub.s32 0, %v98
    %v100 = vrot.slane %v96, %v99
    %v117 = vunpack.c.l.b16 %v79
    %v118 = vunpack.c.l.b16 %v80
    %v119 = vunpack.c.l.b16 %v81
    %v120 = vunpack.c.l.b16 %v82
    %v121 = vunpack.c.l.b16 %v83
    %v122 = vunpack.c.l.b16 %v84
    %v123 = vunpack.c.l.b16 %v85
    %v124 = vunpack.c.l.b16 %v86
    %v125 = vunpack.c.l.b16 %v87
    %v126 = vunpack.c.l.b16 %v88
    %v127 = vunpack.c.l.b16 %v89
    %v128 = vunpack.c.l.b16 %v90
    %v129 = vunpack.c.l.b16 %v91
    %v130 = vunpack.c.l.b16 %v92
    %v131 = vunpack.c.l.b16 %v93
    %v132 = vunpack.c.l.b16 %v94
    %v133 = vpack.c.b16 %v118, %v117
    %v134 = vpack.c.b16 %v120, %v119
    %v135 = vpack.c.b16 %v122, %v121
    %v136 = vpack.c.b16 %v124, %v123
    %v137 = vpack.c.b16 %v126, %v125
    %v138 = vpack.c.b16 %v128, %v127
    %v139 = vpack.c.b16 %v130, %v129
    %v140 = vpack.c.b16 %v132, %v131
    %149 = vmatprep.subr.bf16.mxu0 0
    %150 = vmatpush1.bf16.msra.mxu0 %v140
    %151 = vmatprep.subr.bf16.mxu0 0
    %152 = vmatpush1.bf16.msra.mxu0 %v139
    %153 = vmatprep.subr.bf16.mxu0 0
    %154 = vmatpush1.bf16.msra.mxu0 %v138
    %155 = vmatprep.subr.bf16.mxu0 0
    %156 = vmatpush1.bf16.msra.mxu0 %v137
    %157 = vmatprep.subr.bf16.mxu0 0
    %158 = vmatpush1.bf16.msra.mxu0 %v136
    %159 = vmatprep.subr.bf16.mxu0 0
    %160 = vmatpush1.bf16.msra.mxu0 %v135
    %161 = vmatprep.subr.bf16.mxu0 0
    %162 = vmatpush1.bf16.msra.mxu0 %v134
    %163 = vmatprep.subr.bf16.mxu0 0
    %164 = vmatpush1.bf16.msra.mxu0 %v133
    %165 = vmatprep.subr.bf16.mxu0 0
    %166 = vmatpush2.bf16.msra.mxu0 0
    %167 = vmatprep.subr.bf16.mxu0 0
    %168 = vmatpush2.bf16.msra.mxu0 0
    %169 = vmatprep.subr.bf16.mxu0 0
    %170 = vmatpush2.bf16.msra.mxu0 0
    %171 = vmatprep.subr.bf16.mxu0 0
    %172 = vmatpush2.bf16.msra.mxu0 0
    %173 = vmatprep.subr.bf16.mxu0 0
    %174 = vmatpush2.bf16.msra.mxu0 0
    %175 = vmatprep.subr.bf16.mxu0 0
    %176 = vmatpush2.bf16.msra.mxu0 0
    %177 = vmatprep.subr.bf16.mxu0 0
    %178 = vmatpush2.bf16.msra.mxu0 0
    %179 = vmatprep.subr.bf16.mxu0 0
    %180 = vmatpush2.bf16.msra.mxu0 0
    %181 = vmatprep.mubr.bf16.mxu0 0
    %182 = vmatmul.mubr.bf16.gmra.mxu0 %v95
    %v183 = vpop.f32.mrf.mxu0
    %v184 = vadd.f32 %v100, %v183
    %v185 = vpop.f32.mrf.mxu0
    %v186 = vpop.f32.mrf.mxu0
    %v187 = vpop.f32.mrf.mxu0
    %188 = vdwg.mxu0
    %v189 = vmax.f32 %v184, 0.0
    %v190 = vld [vmem:[#allocation2 + $0x48] sm:$0xf]
    %v191 = vld [vmem:[#allocation2 + $0x4c] sm:$0xf]
    %v192 = vld [vmem:[#allocation2 + $0x50] sm:$0xf]
    %v193 = vld [vmem:[#allocation2 + $0x54] sm:$0xf]
    %v194 = vld [vmem:[#allocation2 + $0x58] sm:$0xf]
    %v195 = vld [vmem:[#allocation2 + $0x5c] sm:$0xf]
    %v196 = vld [vmem:[#allocation2 + $0x60] sm:$0xf]
    %v197 = vld [vmem:[#allocation2 + $0x64] sm:$0xf]
    %v198 = vld [vmem:[#allocation2 + $0x68] sm:$0xf]
    %v199 = vld [vmem:[#allocation2 + $0x6c] sm:$0xf]
    %v200 = vld [vmem:[#allocation2 + $0x70] sm:$0xf]
    %v201 = vld [vmem:[#allocation2 + $0x74] sm:$0xf]
    %v202 = vld [vmem:[#allocation2 + $0x78] sm:$0xf]
    %v203 = vld [vmem:[#allocation2 + $0x7c] sm:$0xf]
    %v204 = vld [vmem:[#allocation2 + $0x80] sm:$0xf]
    %v205 = vld [vmem:[#allocation2 + $0x84] sm:$0xf]
    %v206 = vpack.c.bf16 %v189, %v189
    %v207 = vld [vmem:[%s2 + $0x2] sm:$0x1]
    %v208 = vlaneseq
    %v209 = vshrl.u32 %v208, 7
    %v210 = vsub.s32 0, %v209
    %v211 = vrot.slane %v207, %v210
    %v228 = vunpack.c.l.b16 %v190
    %v229 = vunpack.c.l.b16 %v191
    %v230 = vunpack.c.l.b16 %v192
    %v231 = vunpack.c.l.b16 %v193
    %v232 = vunpack.c.l.b16 %v194
    %v233 = vunpack.c.l.b16 %v195
    %v234 = vunpack.c.l.b16 %v196
    %v235 = vunpack.c.l.b16 %v197
    %v236 = vunpack.c.l.b16 %v198
    %v237 = vunpack.c.l.b16 %v199
    %v238 = vunpack.c.l.b16 %v200
    %v239 = vunpack.c.l.b16 %v201
    %v240 = vunpack.c.l.b16 %v202
    %v241 = vunpack.c.l.b16 %v203
    %v242 = vunpack.c.l.b16 %v204
    %v243 = vunpack.c.l.b16 %v205
    %v244 = vpack.c.b16 %v229, %v228
    %v245 = vpack.c.b16 %v231, %v230
    %v246 = vpack.c.b16 %v233, %v232
    %v247 = vpack.c.b16 %v235, %v234
    %v248 = vpack.c.b16 %v237, %v236
    %v249 = vpack.c.b16 %v239, %v238
    %v250 = vpack.c.b16 %v241, %v240
    %v251 = vpack.c.b16 %v243, %v242
    %260 = vmatprep.subr.bf16.mxu0 0
    %261 = vmatpush1.bf16.msra.mxu0 %v251
    %262 = vmatprep.subr.bf16.mxu0 0
    %263 = vmatpush1.bf16.msra.mxu0 %v250
    %264 = vmatprep.subr.bf16.mxu0 0
    %265 = vmatpush1.bf16.msra.mxu0 %v249
    %266 = vmatprep.subr.bf16.mxu0 0
    %267 = vmatpush1.bf16.msra.mxu0 %v248
    %268 = vmatprep.subr.bf16.mxu0 0
    %269 = vmatpush1.bf16.msra.mxu0 %v247
    %270 = vmatprep.subr.bf16.mxu0 0
    %271 = vmatpush1.bf16.msra.mxu0 %v246
    %272 = vmatprep.subr.bf16.mxu0 0
    %273 = vmatpush1.bf16.msra.mxu0 %v245
    %274 = vmatprep.subr.bf16.mxu0 0
    %275 = vmatpush1.bf16.msra.mxu0 %v244
    %276 = vmatprep.subr.bf16.mxu0 0
    %277 = vmatpush2.bf16.msra.mxu0 0
    %278 = vmatprep.subr.bf16.mxu0 0
    %279 = vmatpush2.bf16.msra.mxu0 0
    %280 = vmatprep.subr.bf16.mxu0 0
    %281 = vmatpush2.bf16.msra.mxu0 0
    %282 = vmatprep.subr.bf16.mxu0 0
    %283 = vmatpush2.bf16.msra.mxu0 0
    %284 = vmatprep.subr.bf16.mxu0 0
    %285 = vmatpush2.bf16.msra.mxu0 0
    %286 = vmatprep.subr.bf16.mxu0 0
    %287 = vmatpush2.bf16.msra.mxu0 0
    %288 = vmatprep.subr.bf16.mxu0 0
    %289 = vmatpush2.bf16.msra.mxu0 0
    %290 = vmatprep.subr.bf16.mxu0 0
    %291 = vmatpush2.bf16.msra.mxu0 0
    %292 = vmatprep.mubr.bf16.mxu0 0
    %293 = vmatmul.mubr.bf16.gmra.mxu0 %v206
    %v294 = vpop.f32.mrf.mxu0
    %v295 = vadd.f32 %v211, %v294
    %v296 = vpop.f32.mrf.mxu0
    %v297 = vpop.f32.mrf.mxu0
    %v298 = vpop.f32.mrf.mxu0
    %299 = vdwg.mxu0
    %v300 = vmax.f32 %v295, 0.0
    %v301 = vld [vmem:[#allocation2 + $0x88] sm:$0xf]
    %v302 = vld [vmem:[#allocation2 + $0x8c] sm:$0xf]
    %v303 = vld [vmem:[#allocation2 + $0x90] sm:$0xf]
    %v304 = vld [vmem:[#allocation2 + $0x94] sm:$0xf]
    %v305 = vld [vmem:[#allocation2 + $0x98] sm:$0xf]
    %v306 = vld [vmem:[#allocation2 + $0x9c] sm:$0xf]
    %v307 = vld [vmem:[#allocation2 + $0xa0] sm:$0xf]
    %v308 = vld [vmem:[#allocation2 + $0xa4] sm:$0xf]
    %v309 = vld [vmem:[#allocation2 + $0xa8] sm:$0xf]
    %v310 = vld [vmem:[#allocation2 + $0xac] sm:$0xf]
    %v311 = vld [vmem:[#allocation2 + $0xb0] sm:$0xf]
    %v312 = vld [vmem:[#allocation2 + $0xb4] sm:$0xf]
    %v313 = vld [vmem:[#allocation2 + $0xb8] sm:$0xf]
    %v314 = vld [vmem:[#allocation2 + $0xbc] sm:$0xf]
    %v315 = vld [vmem:[#allocation2 + $0xc0] sm:$0xf]
    %v316 = vld [vmem:[#allocation2 + $0xc4] sm:$0xf]
    %v317 = vpack.c.bf16 %v300, %v300
    %v318 = vld [vmem:[%s2 + $0x3] sm:$0x1]
    %v319 = vlaneseq
    %v320 = vshrl.u32 %v319, 7
    %v321 = vsub.s32 0, %v320
    %v322 = vrot.slane %v318, %v321
    %v339 = vunpack.c.l.b16 %v301
    %v340 = vunpack.c.l.b16 %v302
    %v341 = vunpack.c.l.b16 %v303
    %v342 = vunpack.c.l.b16 %v304
    %v343 = vunpack.c.l.b16 %v305
    %v344 = vunpack.c.l.b16 %v306
    %v345 = vunpack.c.l.b16 %v307
    %v346 = vunpack.c.l.b16 %v308
    %v347 = vunpack.c.l.b16 %v309
    %v348 = vunpack.c.l.b16 %v310
    %v349 = vunpack.c.l.b16 %v311
    %v350 = vunpack.c.l.b16 %v312
    %v351 = vunpack.c.l.b16 %v313
    %v352 = vunpack.c.l.b16 %v314
    %v353 = vunpack.c.l.b16 %v315
    %v354 = vunpack.c.l.b16 %v316
    %v355 = vpack.c.b16 %v340, %v339
    %v356 = vpack.c.b16 %v342, %v341
    %v357 = vpack.c.b16 %v344, %v343
    %v358 = vpack.c.b16 %v346, %v345
    %v359 = vpack.c.b16 %v348, %v347
    %v360 = vpack.c.b16 %v350, %v349
    %v361 = vpack.c.b16 %v352, %v351
    %v362 = vpack.c.b16 %v354, %v353
    %371 = vmatprep.subr.bf16.mxu0 0
    %372 = vmatpush1.bf16.msra.mxu0 %v362
    %373 = vmatprep.subr.bf16.mxu0 0
    %374 = vmatpush1.bf16.msra.mxu0 %v361
    %375 = vmatprep.subr.bf16.mxu0 0
    %376 = vmatpush1.bf16.msra.mxu0 %v360
    %377 = vmatprep.subr.bf16.mxu0 0
    %378 = vmatpush1.bf16.msra.mxu0 %v359
    %379 = vmatprep.subr.bf16.mxu0 0
    %380 = vmatpush1.bf16.msra.mxu0 %v358
    %381 = vmatprep.subr.bf16.mxu0 0
    %382 = vmatpush1.bf16.msra.mxu0 %v357
    %383 = vmatprep.subr.bf16.mxu0 0
    %384 = vmatpush1.bf16.msra.mxu0 %v356
    %385 = vmatprep.subr.bf16.mxu0 0
    %386 = vmatpush1.bf16.msra.mxu0 %v355
    %387 = vmatprep.subr.bf16.mxu0 0
    %388 = vmatpush2.bf16.msra.mxu0 0
    %389 = vmatprep.subr.bf16.mxu0 0
    %390 = vmatpush2.bf16.msra.mxu0 0
    %391 = vmatprep.subr.bf16.mxu0 0
    %392 = vmatpush2.bf16.msra.mxu0 0
    %393 = vmatprep.subr.bf16.mxu0 0
    %394 = vmatpush2.bf16.msra.mxu0 0
    %395 = vmatprep.subr.bf16.mxu0 0
    %396 = vmatpush2.bf16.msra.mxu0 0
    %397 = vmatprep.subr.bf16.mxu0 0
    %398 = vmatpush2.bf16.msra.mxu0 0
    %399 = vmatprep.subr.bf16.mxu0 0
    %400 = vmatpush2.bf16.msra.mxu0 0
    %401 = vmatprep.subr.bf16.mxu0 0
    %402 = vmatpush2.bf16.msra.mxu0 0
    %403 = vmatprep.mubr.bf16.mxu0 0
    %404 = vmatmul.mubr.bf16.gmra.mxu0 %v317
    %v405 = vpop.f32.mrf.mxu0
    %v406 = vadd.f32 %v322, %v405
    %v407 = vpop.f32.mrf.mxu0
    %v408 = vpop.f32.mrf.mxu0
    %v409 = vpop.f32.mrf.mxu0
    %410 = vdwg.mxu0
    %vm411 = vcmask 64512
    %412 = vst.msk [vmem:[%s3] sm:$0xff] %vm411, %v406
    // Predicated region
    $region18: #{iris_classifier_forward.1} parent=1 // pred_check
      _
    $region19: #{iris_classifier_forward.1} parent=1 // pred_check_branch
      %414 = sbr.rel (0) target = $region21
    $region20: #{iris_classifier_forward.1} parent=1 // pred_region
      _
    $region21: #{iris_classifier_forward.1} parent=1 // pred_fallthru
      _
    // Predicated region
    $region22: #{iris_classifier_forward.1} parent=1 // pred_check
      _
    $region23: #{iris_classifier_forward.1} parent=1 // pred_check_branch
      %416 = sbr.rel (0) target = $region25
    $region24: #{iris_classifier_forward.1} parent=1 // pred_region
      _
    $region25: #{iris_classifier_forward.1} parent=1 // pred_fallthru
      _
    %417 = vsyncpa [#allocation3], 1

</llo_original>
